<compile_context>
chip_gen: v7x
topology: tpu7x:2x2x1
jax: 0.10.0
libtpu: 0.0.40
codegen_flags: <defaults>
</compile_context>

<pallas_src>
import functools

import jax
import jax.numpy as jnp
from jax import lax
from jax.experimental import pallas as pl
from jax.experimental.pallas import tpu as pltpu


def _monotonic_attention_kernel(
    zflag_ref,   # SMEM (1,) int32 : 1 iff attention_weights_cat.sum() == 0
    qt_ref,      # (1, Drnn, 1)    query as a column
    mem_ref,     # (1, Tp, E)      encoder outputs (zero padded along T)
    pmem_ref,    # (1, A, Tp)      processed memory, T on lanes
    xcol_ref,    # (1, 2K, Tp)     im2col of padded attention_weights_cat
    prev_ref,    # (1, 1, Tp)      previous attention weights
    tri_ref,     # (Tp, Tp)        tri[s, t] = 1.0 if s <= t else 0.0
    wq_ref,      # (A, Drnn)
    weff_ref,    # (A, 2K)         folded conv+projection weight
    wv_ref,      # (1, A)
    ctx_ref,     # out (1, 1, E)
    alpha_ref,   # out (1, 1, Tp)
    *, T):
  f32 = jnp.float32
  Tp = alpha_ref.shape[2]

  # ---- alignment energies (MXU matmuls, T on the lane dim) -----------------
  q_col = qt_ref[0]                                                   # (Drnn, 1)
  pq = jnp.dot(wq_ref[...], q_col, preferred_element_type=f32)        # (A, 1)
  loc = jnp.dot(weff_ref[...], xcol_ref[0],
                preferred_element_type=f32)                           # (A, Tp)
  e_in = jnp.tanh(pq + loc + pmem_ref[0])                             # (A, Tp)
  energies = jnp.dot(wv_ref[...], e_in, preferred_element_type=f32)   # (1, Tp)

  # ---- monotonic attention (inference branch) ------------------------------
  prev = prev_ref[0]                                                  # (1, Tp)
  tri = tri_ref[...]                                                  # (Tp, Tp)

  pos = lax.broadcasted_iota(jnp.int32, (1, Tp), 1)
  valid = pos < T                                                     # mask lane padding

  # inclusive cumsum along T via the triangular matmul (MXU)
  csum_prev = jnp.dot(prev, tri, preferred_element_type=f32)          # (1, Tp)

  above = jnp.where(energies > 0.0, 1.0, 0.0)
  p_select = jnp.where(valid, above * csum_prev, 0.0)                 # (1, Tp)

  # exclusive cumprod of (1 - p_select): log-space cumsum via the same tri matmul,
  # clamped away from zero (torch safe_cumprod style) so log never hits -inf.
  log1m = jnp.log(jnp.maximum(1.0 - p_select, 1e-10))
  incl = jnp.dot(log1m, tri, preferred_element_type=f32)              # inclusive log-cumsum
  excl_cumprod = jnp.exp(incl - log1m)                                # exclusive cumprod
  alpha = p_select * excl_cumprod                                     # (1, Tp)

  # batches that attended to nothing force attention onto the last real frame
  attended = jnp.sum(alpha, axis=1, keepdims=True)                    # (1, 1)
  alpha = jnp.where(jnp.logical_and(pos == T - 1, attended == 0.0), 1.0, alpha)

  # all-zero attention_weights_cat -> one-hot on frame 0 (flag from wrapper, SMEM)
  is_zero = zflag_ref[0]
  alpha = jnp.where(is_zero == 1, jnp.where(pos == 0, 1.0, 0.0), alpha)

  # attention context: (1, Tp) @ (Tp, E) on the MXU (padded rows are zero)
  ctx = jnp.dot(alpha, mem_ref[0], preferred_element_type=f32)        # (1, E)

  ctx_ref[...] = ctx[None].astype(ctx_ref.dtype)
  alpha_ref[...] = alpha[None].astype(alpha_ref.dtype)


def monotonic_attention(query, memory, processed_memory, attention_weights_cat,
                        wq, wconv, wproj, wv):
  f32 = jnp.float32
  B, T, E = memory.shape
  Drnn = query.shape[1]
  A = processed_memory.shape[2]
  F, _, K = wconv.shape
  pad = (K - 1) // 2
  Tp = ((T + 127) // 128) * 128            # lane-dense time axis

  awc = attention_weights_cat.astype(f32)

  # --- wrapper-side layout glue (all pure reshapes/pads/small einsums) -------
  awc_tp = jnp.pad(awc, ((0, 0), (0, 0), (0, Tp - T)))                 # (B,2,Tp)
  x_pad = jnp.pad(awc_tp, ((0, 0), (0, 0), (pad, pad)))                # (B,2,Tp+2p)
  # im2col, taps indexed c*K + k, T on lanes: (B, 2K, Tp)
  xcol_t = jnp.stack([x_pad[:, c, k:k + Tp]
                      for c in range(2) for k in range(K)], axis=1)
  # fold conv + projection: W_eff[a, c*K+k] = sum_f wproj[a,f] * wconv[f,c,k]
  w_eff_t = jnp.einsum('af,fck->ack', wproj.astype(f32),
                       wconv.astype(f32)).reshape(A, 2 * K)

  q_t = query.astype(f32)[:, :, None]                                  # (B,Drnn,1)
  prev = jnp.pad(awc[:, 0], ((0, 0), (0, Tp - T)))[:, None, :]         # (B,1,Tp)
  pmem_t = jnp.pad(processed_memory.astype(f32),
                   ((0, 0), (0, Tp - T), (0, 0))).transpose(0, 2, 1)   # (B,A,Tp)
  mem_p = jnp.pad(memory.astype(f32), ((0, 0), (0, Tp - T), (0, 0)))   # (B,Tp,E)

  # (Tp, Tp) inclusive-cumsum operator, built once here (not per kernel call)
  tri = jnp.triu(jnp.ones((Tp, Tp), f32))

  # all-zero special-case flag as an SMEM scalar
  zero_flag = (jnp.sum(awc) == 0.0).astype(jnp.int32).reshape(1)

  kernel = functools.partial(_monotonic_attention_kernel, T=T)

  grid_spec = pltpu.PrefetchScalarGridSpec(
      num_scalar_prefetch=1,
      grid=(B,),
      in_specs=[
          pl.BlockSpec((1, Drnn, 1), lambda b, z: (b, 0, 0)),     # q_t
          pl.BlockSpec((1, Tp, E), lambda b, z: (b, 0, 0)),       # memory
          pl.BlockSpec((1, A, Tp), lambda b, z: (b, 0, 0)),       # pmem_t
          pl.BlockSpec((1, 2 * K, Tp), lambda b, z: (b, 0, 0)),   # xcol_t
          pl.BlockSpec((1, 1, Tp), lambda b, z: (b, 0, 0)),       # prev
          pl.BlockSpec((Tp, Tp), lambda b, z: (0, 0)),            # tri (shared)
          pl.BlockSpec((A, Drnn), lambda b, z: (0, 0)),           # wq
          pl.BlockSpec((A, 2 * K), lambda b, z: (0, 0)),          # w_eff_t
          pl.BlockSpec((1, A), lambda b, z: (0, 0)),              # wv
      ],
      out_specs=(
          pl.BlockSpec((1, 1, E), lambda b, z: (b, 0, 0)),        # ctx
          pl.BlockSpec((1, 1, Tp), lambda b, z: (b, 0, 0)),       # alpha
      ),
  )

  ctx, alpha = pl.pallas_call(
      kernel,
      out_shape=(jax.ShapeDtypeStruct((B, 1, E), f32),
                 jax.ShapeDtypeStruct((B, 1, Tp), f32)),
      grid_spec=grid_spec,
      compiler_params=pltpu.CompilerParams(
          dimension_semantics=("parallel",)),
  )(zero_flag, q_t, mem_p, pmem_t, xcol_t, prev, tri,
    wq.astype(f32), w_eff_t, wv.astype(f32))

  return ctx[:, 0, :], alpha[:, 0, :T]


# ---------------- pure-JAX reference (mirrors the torch eval path) -------------
def reference(query, memory, processed_memory, awc, wq, wconv, wproj, wv):
  B, T, E = memory.shape
  K = wconv.shape[2]
  pad = (K - 1) // 2
  pq = query @ wq.T                                           # (B, A)
  xp = jnp.pad(awc, ((0, 0), (0, 0), (pad, pad)))
  conv = jnp.zeros((B, wconv.shape[0], T), jnp.float32)
  for k in range(K):
    conv = conv + jnp.einsum('bct,fc->bft', xp[:, :, k:k + T], wconv[:, :, k])
  loc = jnp.einsum('bft,af->bta', conv, wproj)
  energies = jnp.einsum('bta,a->bt',
                        jnp.tanh(pq[:, None, :] + loc + processed_memory), wv[0])
  prev = awc[:, 0]
  above = (energies > 0).astype(jnp.float32)
  p_select = above * jnp.cumsum(prev, axis=1)
  one_x = jnp.concatenate([jnp.ones((B, 1)), (1.0 - p_select)[:, :-1]], axis=1)
  alpha = p_select * jnp.cumprod(one_x, axis=1)
  attended = alpha.sum(axis=1)
  alpha = alpha.at[:, -1].set(jnp.where(attended == 0, 1.0, alpha[:, -1]))
  alpha = jnp.where(awc.sum() == 0,
                    jnp.zeros_like(alpha).at[:, 0].set(1.0), alpha)
  ctx = jnp.einsum('bt,bte->be', alpha, memory)
  return ctx, alpha


if __name__ == "__main__":
  # small shapes consistent with the module
  B, T = 2, 8
  Drnn, E, A = 32, 32, 16          # attention_rnn_dim, embedding_dim, attention_dim
  F, K = 4, 3                      # attention_location_n_filters, kernel_size

  key = jax.random.PRNGKey(0)
  ks = jax.random.split(key, 9)

  query = jax.random.normal(ks[0], (B, Drnn), jnp.float32)
  memory = jax.random.normal(ks[1], (B, T, E), jnp.float32)
  processed_memory = jax.random.normal(ks[2], (B, T, A), jnp.float32)
  prev_attn = jax.nn.softmax(jax.random.normal(ks[3], (B, T), jnp.float32), axis=1)
  cum_attn = jnp.cumsum(prev_attn, axis=1)
  attention_weights_cat = jnp.stack([prev_attn, cum_attn], axis=1)   # (B, 2, T)

  # deterministic parameter init (torch Linear layout: (out, in))
  wq = 0.1 * jax.random.normal(ks[4], (A, Drnn), jnp.float32)
  wconv = 0.1 * jax.random.normal(ks[5], (F, 2, K), jnp.float32)
  wproj = 0.1 * jax.random.normal(ks[6], (A, F), jnp.float32)
  wv = 0.1 * jax.random.normal(ks[7], (1, A), jnp.float32)

  ctx, alpha = monotonic_attention(query, memory, processed_memory,
                                   attention_weights_cat, wq, wconv, wproj, wv)
  jax.block_until_ready((ctx, alpha))

  ctx_ref, alpha_ref = reference(query, memory, processed_memory,
                                 attention_weights_cat, wq, wconv, wproj, wv)
  assert jnp.allclose(alpha, alpha_ref, atol=1e-5, rtol=1e-5), "alpha mismatch"
  assert jnp.allclose(ctx, ctx_ref, atol=1e-5, rtol=1e-5), "context mismatch"

  # also exercise the all-zero attention_weights_cat special case
  ctx0, alpha0 = monotonic_attention(query, memory, processed_memory,
                                     jnp.zeros_like(attention_weights_cat),
                                     wq, wconv, wproj, wv)
  jax.block_until_ready((ctx0, alpha0))
  assert jnp.allclose(alpha0[:, 0], 1.0) and jnp.allclose(alpha0[:, 1:], 0.0)

  print("KERNEL_OK")
</pallas_src>

<mosaic_0001>
module attributes {stable_mosaic.version = 11 : i64} {
  func.func @_monotonic_attention_kernel(%arg0: i32, %arg1: memref<1xi32, #tpu.memory_space<smem>>, %arg2: memref<1x32x1xf32, #tpu.memory_space<vmem>>, %arg3: memref<1x128x32xf32, #tpu.memory_space<vmem>>, %arg4: memref<1x16x128xf32, #tpu.memory_space<vmem>>, %arg5: memref<1x6x128xf32, #tpu.memory_space<vmem>>, %arg6: memref<1x1x128xf32, #tpu.memory_space<vmem>>, %arg7: memref<128x128xf32, #tpu.memory_space<vmem>>, %arg8: memref<16x32xf32, #tpu.memory_space<vmem>>, %arg9: memref<16x6xf32, #tpu.memory_space<vmem>>, %arg10: memref<1x16xf32, #tpu.memory_space<vmem>>, %arg11: memref<1x1x32xf32, #tpu.memory_space<vmem>>, %arg12: memref<1x1x128xf32, #tpu.memory_space<vmem>>) attributes {dimension_semantics = [#tpu.dimension_semantics<parallel>], iteration_bounds = array<i64: 2>, scalar_prefetch = 1 : i64, scratch_operands = 0 : i64, tpu.core_type = #tpu.core_type<tc>, window_params = [{transform_indices = @transform_0, window_bounds = array<i64: 1, 32, 1>}, {transform_indices = @transform_1, window_bounds = array<i64: 1, 128, 32>}, {transform_indices = @transform_2, window_bounds = array<i64: 1, 16, 128>}, {transform_indices = @transform_3, window_bounds = array<i64: 1, 6, 128>}, {transform_indices = @transform_4, window_bounds = array<i64: 1, 1, 128>}, {pipeline_mode = #tpu.pipeline_mode<synchronous>, transform_indices = @transform_5, window_bounds = array<i64: 128, 128>}, {pipeline_mode = #tpu.pipeline_mode<synchronous>, transform_indices = @transform_6, window_bounds = array<i64: 16, 32>}, {pipeline_mode = #tpu.pipeline_mode<synchronous>, transform_indices = @transform_7, window_bounds = array<i64: 16, 6>}, {pipeline_mode = #tpu.pipeline_mode<synchronous>, transform_indices = @transform_8, window_bounds = array<i64: 1, 16>}, {transform_indices = @transform_9, window_bounds = array<i64: 1, 1, 32>}, {transform_indices = @transform_10, window_bounds = array<i64: 1, 1, 128>}]} {
    %c0 = arith.constant 0 : index
    %c0_0 = arith.constant 0 : index
    %c0_1 = arith.constant 0 : index
    %0 = vector.load %arg2[%c0, %c0_0, %c0_1] : memref<1x32x1xf32, #tpu.memory_space<vmem>>, vector<1x32x1xf32>
    %1 = vector.shape_cast %0 : vector<1x32x1xf32> to vector<32x1xf32>
    %c0_2 = arith.constant 0 : index
    %c0_3 = arith.constant 0 : index
    %2 = vector.load %arg8[%c0_2, %c0_3] : memref<16x32xf32, #tpu.memory_space<vmem>>, vector<16x32xf32>
    %cst = arith.constant dense<0.000000e+00> : vector<16x1xf32>
    %3 = tpu.matmul %2, %1, %cst {dimension_numbers = #tpu.dot_dimension_numbers<[1], [0], [0], [1], [0, 0, 1, 1], [], []>} : vector<16x32xf32>, vector<32x1xf32>, vector<16x1xf32> -> vector<16x1xf32>
    %c0_4 = arith.constant 0 : index
    %c0_5 = arith.constant 0 : index
    %4 = vector.load %arg9[%c0_4, %c0_5] : memref<16x6xf32, #tpu.memory_space<vmem>>, vector<16x6xf32>
    %c0_6 = arith.constant 0 : index
    %c0_7 = arith.constant 0 : index
    %c0_8 = arith.constant 0 : index
    %5 = vector.load %arg5[%c0_6, %c0_7, %c0_8] : memref<1x6x128xf32, #tpu.memory_space<vmem>>, vector<1x6x128xf32>
    %6 = vector.shape_cast %5 : vector<1x6x128xf32> to vector<6x128xf32>
    %cst_9 = arith.constant dense<0.000000e+00> : vector<16x128xf32>
    %7 = tpu.matmul %4, %6, %cst_9 {dimension_numbers = #tpu.dot_dimension_numbers<[1], [0], [0], [1], [0, 0, 1, 1], [], []>} : vector<16x6xf32>, vector<6x128xf32>, vector<16x128xf32> -> vector<16x128xf32>
    %8 = vector.broadcast %3 : vector<16x1xf32> to vector<16x128xf32>
    %9 = arith.addf %8, %7 : vector<16x128xf32>
    %c0_10 = arith.constant 0 : index
    %c0_11 = arith.constant 0 : index
    %c0_12 = arith.constant 0 : index
    %10 = vector.load %arg4[%c0_10, %c0_11, %c0_12] : memref<1x16x128xf32, #tpu.memory_space<vmem>>, vector<1x16x128xf32>
    %11 = vector.shape_cast %10 : vector<1x16x128xf32> to vector<16x128xf32>
    %12 = arith.addf %9, %11 : vector<16x128xf32>
    %13 = math.tanh %12 : vector<16x128xf32>
    %c0_13 = arith.constant 0 : index
    %c0_14 = arith.constant 0 : index
    %14 = vector.load %arg10[%c0_13, %c0_14] : memref<1x16xf32, #tpu.memory_space<vmem>>, vector<1x16xf32>
    %cst_15 = arith.constant dense<0.000000e+00> : vector<1x128xf32>
    %15 = tpu.matmul %14, %13, %cst_15 {dimension_numbers = #tpu.dot_dimension_numbers<[1], [0], [0], [1], [0, 0, 1, 1], [], []>} : vector<1x16xf32>, vector<16x128xf32>, vector<1x128xf32> -> vector<1x128xf32>
    %c0_16 = arith.constant 0 : index
    %c0_17 = arith.constant 0 : index
    %c0_18 = arith.constant 0 : index
    %16 = vector.load %arg6[%c0_16, %c0_17, %c0_18] : memref<1x1x128xf32, #tpu.memory_space<vmem>>, vector<1x1x128xf32>
    %17 = vector.shape_cast %16 : vector<1x1x128xf32> to vector<1x128xf32>
    %c0_19 = arith.constant 0 : index
    %c0_20 = arith.constant 0 : index
    %18 = vector.load %arg7[%c0_19, %c0_20] : memref<128x128xf32, #tpu.memory_space<vmem>>, vector<128x128xf32>
    %19 = tpu.iota {dimensions = array<i32: 1>} : vector<1x128xi32>
    %c8_i32 = arith.constant 8 : i32
    %20 = vector.broadcast %c8_i32 : i32 to vector<1x128xi32>
    %21 = arith.cmpi slt, %19, %20 : vector<1x128xi32>
    %cst_21 = arith.constant dense<0.000000e+00> : vector<1x128xf32>
    %22 = tpu.matmul %17, %18, %cst_21 {dimension_numbers = #tpu.dot_dimension_numbers<[1], [0], [0], [1], [0, 0, 1, 1], [], []>} : vector<1x128xf32>, vector<128x128xf32>, vector<1x128xf32> -> vector<1x128xf32>
    %cst_22 = arith.constant 0.000000e+00 : f32
    %23 = vector.broadcast %cst_22 : f32 to vector<1x128xf32>
    %24 = arith.cmpf ogt, %15, %23 : vector<1x128xf32>
    %cst_23 = arith.constant 1.000000e+00 : f32
    %cst_24 = arith.constant 0.000000e+00 : f32
    %25 = vector.broadcast %cst_23 : f32 to vector<1x128xf32>
    %26 = vector.broadcast %cst_24 : f32 to vector<1x128xf32>
    %27 = arith.select %24, %25, %26 : vector<1x128xi1>, vector<1x128xf32>
    %28 = arith.mulf %27, %22 : vector<1x128xf32>
    %cst_25 = arith.constant 0.000000e+00 : f32
    %29 = vector.broadcast %cst_25 : f32 to vector<1x128xf32>
    %30 = arith.select %21, %28, %29 : vector<1x128xi1>, vector<1x128xf32>
    %cst_26 = arith.constant 1.000000e+00 : f32
    %31 = vector.broadcast %cst_26 : f32 to vector<1x128xf32>
    %32 = arith.subf %31, %30 : vector<1x128xf32>
    %cst_27 = arith.constant 1.000000e-10 : f32
    %33 = vector.broadcast %cst_27 : f32 to vector<1x128xf32>
    %34 = arith.maximumf %32, %33 : vector<1x128xf32>
    %35 = math.log %34 : vector<1x128xf32>
    %cst_28 = arith.constant dense<0.000000e+00> : vector<1x128xf32>
    %36 = tpu.matmul %35, %18, %cst_28 {dimension_numbers = #tpu.dot_dimension_numbers<[1], [0], [0], [1], [0, 0, 1, 1], [], []>} : vector<1x128xf32>, vector<128x128xf32>, vector<1x128xf32> -> vector<1x128xf32>
    %37 = arith.subf %36, %35 : vector<1x128xf32>
    %38 = math.exp %37 : vector<1x128xf32>
    %39 = arith.mulf %30, %38 : vector<1x128xf32>
    %cst_29 = arith.constant dense<0.000000e+00> : vector<1xf32>
    %40 = vector.multi_reduction <add>, %39, %cst_29 [1] : vector<1x128xf32> to vector<1xf32>
    %41 = vector.shape_cast %40 : vector<1xf32> to vector<1x1xf32>
    %c7_i32 = arith.constant 7 : i32
    %42 = vector.broadcast %c7_i32 : i32 to vector<1x128xi32>
    %43 = arith.cmpi eq, %19, %42 : vector<1x128xi32>
    %cst_30 = arith.constant 0.000000e+00 : f32
    %44 = vector.broadcast %cst_30 : f32 to vector<1x1xf32>
    %45 = arith.cmpf oeq, %41, %44 : vector<1x1xf32>
    %46 = vector.broadcast %45 : vector<1x1xi1> to vector<1x128xi1>
    %47 = arith.andi %43, %46 : vector<1x128xi1>
    %cst_31 = arith.constant 1.000000e+00 : f32
    %48 = vector.broadcast %cst_31 : f32 to vector<1x128xf32>
    %49 = arith.select %47, %48, %39 : vector<1x128xi1>, vector<1x128xf32>
    %c0_32 = arith.constant 0 : index
    %50 = memref.load %arg1[%c0_32] : memref<1xi32, #tpu.memory_space<smem>>
    %c1_i32 = arith.constant 1 : i32
    %51 = arith.cmpi eq, %50, %c1_i32 : i32
    %c0_i32 = arith.constant 0 : i32
    %52 = vector.broadcast %c0_i32 : i32 to vector<1x128xi32>
    %53 = arith.cmpi eq, %19, %52 : vector<1x128xi32>
    %cst_33 = arith.constant 1.000000e+00 : f32
    %cst_34 = arith.constant 0.000000e+00 : f32
    %54 = vector.broadcast %cst_33 : f32 to vector<1x128xf32>
    %55 = vector.broadcast %cst_34 : f32 to vector<1x128xf32>
    %56 = arith.select %53, %54, %55 : vector<1x128xi1>, vector<1x128xf32>
    %57 = arith.select %51, %56, %49 : vector<1x128xf32>
    %c0_35 = arith.constant 0 : index
    %c0_36 = arith.constant 0 : index
    %c0_37 = arith.constant 0 : index
    %58 = vector.load %arg3[%c0_35, %c0_36, %c0_37] : memref<1x128x32xf32, #tpu.memory_space<vmem>>, vector<1x128x32xf32>
    %59 = vector.shape_cast %58 : vector<1x128x32xf32> to vector<128x32xf32>
    %cst_38 = arith.constant dense<0.000000e+00> : vector<1x32xf32>
    %60 = tpu.matmul %57, %59, %cst_38 {dimension_numbers = #tpu.dot_dimension_numbers<[1], [0], [0], [1], [0, 0, 1, 1], [], []>} : vector<1x128xf32>, vector<128x32xf32>, vector<1x32xf32> -> vector<1x32xf32>
    %61 = vector.shape_cast %60 : vector<1x32xf32> to vector<1x1x32xf32>
    %c0_39 = arith.constant 0 : index
    %c0_40 = arith.constant 0 : index
    %c0_41 = arith.constant 0 : index
    %62 = vector.load %arg11[%c0_39, %c0_40, %c0_41] : memref<1x1x32xf32, #tpu.memory_space<vmem>>, vector<1x1x32xf32>
    tpu.vector_store %arg11[%c0_39, %c0_40, %c0_41], %61 {strides = array<i32>} : memref<1x1x32xf32, #tpu.memory_space<vmem>>, vector<1x1x32xf32>,
    %63 = vector.shape_cast %57 : vector<1x128xf32> to vector<1x1x128xf32>
    %c0_42 = arith.constant 0 : index
    %c0_43 = arith.constant 0 : index
    %c0_44 = arith.constant 0 : index
    %64 = vector.load %arg12[%c0_42, %c0_43, %c0_44] : memref<1x1x128xf32, #tpu.memory_space<vmem>>, vector<1x1x128xf32>
    tpu.vector_store %arg12[%c0_42, %c0_43, %c0_44], %63 {strides = array<i32>} : memref<1x1x128xf32, #tpu.memory_space<vmem>>, vector<1x1x128xf32>,
    return
  }
  func.func @transform_0(%arg0: i32, %arg1: memref<1xi32, #tpu.memory_space<smem>>) -> (i32, i32, i32) {
    %c0_i32 = arith.constant 0 : i32
    %c0_i32_0 = arith.constant 0 : i32
    %c0_i32_1 = arith.constant 0 : i32
    return %arg0, %c0_i32, %c0_i32_0 : i32, i32, i32
  }
  func.func @transform_1(%arg0: i32, %arg1: memref<1xi32, #tpu.memory_space<smem>>) -> (i32, i32, i32) {
    %c0_i32 = arith.constant 0 : i32
    %c0_i32_0 = arith.constant 0 : i32
    %c0_i32_1 = arith.constant 0 : i32
    return %arg0, %c0_i32, %c0_i32_0 : i32, i32, i32
  }
  func.func @transform_2(%arg0: i32, %arg1: memref<1xi32, #tpu.memory_space<smem>>) -> (i32, i32, i32) {
    %c0_i32 = arith.constant 0 : i32
    %c0_i32_0 = arith.constant 0 : i32
    %c0_i32_1 = arith.constant 0 : i32
    return %arg0, %c0_i32, %c0_i32_0 : i32, i32, i32
  }
  func.func @transform_3(%arg0: i32, %arg1: memref<1xi32, #tpu.memory_space<smem>>) -> (i32, i32, i32) {
    %c0_i32 = arith.constant 0 : i32
    %c0_i32_0 = arith.constant 0 : i32
    %c0_i32_1 = arith.constant 0 : i32
    return %arg0, %c0_i32, %c0_i32_0 : i32, i32, i32
  }
  func.func @transform_4(%arg0: i32, %arg1: memref<1xi32, #tpu.memory_space<smem>>) -> (i32, i32, i32) {
    %c0_i32 = arith.constant 0 : i32
    %c0_i32_0 = arith.constant 0 : i32
    %c0_i32_1 = arith.constant 0 : i32
    return %arg0, %c0_i32, %c0_i32_0 : i32, i32, i32
  }
  func.func @transform_5(%arg0: i32, %arg1: memref<1xi32, #tpu.memory_space<smem>>) -> (i32, i32) {
    %c0_i32 = arith.constant 0 : i32
    %c0_i32_0 = arith.constant 0 : i32
    %c0_i32_1 = arith.constant 0 : i32
    return %c0_i32, %c0_i32_0 : i32, i32
  }
  func.func @transform_6(%arg0: i32, %arg1: memref<1xi32, #tpu.memory_space<smem>>) -> (i32, i32) {
    %c0_i32 = arith.constant 0 : i32
    %c0_i32_0 = arith.constant 0 : i32
    %c0_i32_1 = arith.constant 0 : i32
    return %c0_i32, %c0_i32_0 : i32, i32
  }
  func.func @transform_7(%arg0: i32, %arg1: memref<1xi32, #tpu.memory_space<smem>>) -> (i32, i32) {
    %c0_i32 = arith.constant 0 : i32
    %c0_i32_0 = arith.constant 0 : i32
    %c0_i32_1 = arith.constant 0 : i32
    return %c0_i32, %c0_i32_0 : i32, i32
  }
  func.func @transform_8(%arg0: i32, %arg1: memref<1xi32, #tpu.memory_space<smem>>) -> (i32, i32) {
    %c0_i32 = arith.constant 0 : i32
    %c0_i32_0 = arith.constant 0 : i32
    %c0_i32_1 = arith.constant 0 : i32
    return %c0_i32, %c0_i32_0 : i32, i32
  }
  func.func @transform_9(%arg0: i32, %arg1: memref<1xi32, #tpu.memory_space<smem>>) -> (i32, i32, i32) {
    %c0_i32 = arith.constant 0 : i32
    %c0_i32_0 = arith.constant 0 : i32
    %c0_i32_1 = arith.constant 0 : i32
    return %arg0, %c0_i32, %c0_i32_0 : i32, i32, i32
  }
  func.func @transform_10(%arg0: i32, %arg1: memref<1xi32, #tpu.memory_space<smem>>) -> (i32, i32, i32) {
    %c0_i32 = arith.constant 0 : i32
    %c0_i32_0 = arith.constant 0 : i32
    %c0_i32_1 = arith.constant 0 : i32
    return %arg0, %c0_i32, %c0_i32_0 : i32, i32, i32
  }
}

</mosaic_0001>

<llo_original>
// kernel: tpu_custom_call.1
$region0: #{tpu_custom_call.1}
  #allocation0 [shape = 'u32[]', space=smem, size = 0x4, offset = 0x4, fixed_abs, tag = 'smem constant byte address 0x4 - core index']
  #allocation1 [shape = 'u32[144,128]{1,0:T(1,128)}', space=vmem, size = 0x12000, scoped, tag = 'internal scratch']
  #allocation2 [shape = 's32[1]{0}', space=sflag, size = 0x4, scoped, tag = 'scoped memory for tpu_custom_call.1']
  #allocation3 [shape = 's32[1]{0:T(128)S(6)}', space=smem, size = 0x200, scoped, tag = 'prefetched SMEM operand 0']
  %s0 = inlined_call_operand.<no memory space> [shape: s32[1], index: 0, kind: input, shape index: {}]
  %s1 = inlined_call_operand.vmem [shape: f32[2,32,1], index: 1, kind: input, shape index: {}]
  %s2 = inlined_call_operand.vmem [shape: f32[2,128,32], index: 2, kind: input, shape index: {}]
  %s3 = inlined_call_operand.vmem [shape: f32[2,16,128], index: 3, kind: input, shape index: {}]
  %s4 = inlined_call_operand.vmem [shape: f32[2,6,128], index: 4, kind: input, shape index: {}]
  %s5 = inlined_call_operand.vmem [shape: f32[2,1,128], index: 5, kind: input, shape index: {}]
  %s6 = inlined_call_operand.vmem [shape: f32[128,128], index: 6, kind: input, shape index: {}]
  %s7 = inlined_call_operand.vmem [shape: f32[16,32], index: 7, kind: input, shape index: {}]
  %s8 = inlined_call_operand.vmem [shape: f32[16,6], index: 8, kind: input, shape index: {}]
  %s9 = inlined_call_operand.vmem [shape: f32[1,16], index: 9, kind: input, shape index: {}]
  %s10 = inlined_call_operand.hbm [shape: f32[2,1,32], index: 10, kind: output, shape index: {0}]
  %s11 = inlined_call_operand.hbm [shape: f32[2,1,128], index: 11, kind: output, shape index: {1}]
  %12 = xla_tuple %s10, %s11
  %s13 = sld [smem:[#allocation0]]
  $region77: #{tpu_custom_call.1} parent=0
    _
  %s15 = ssub.s32 1, %s13
  %s16 = scalar_select 0, %s15, %s13
  %17 = sst [smem:[#allocation3]] %s0
  $region1: #{tpu_custom_call.1} parent=0
    #allocation4 [shape = 'u8[1024]{0}', space=vmem, size = 0x400, scoped, tag = 'output window, operand 0']
    #allocation5 [shape = 's32[2]{0}', space=sflag, size = 0x8, scoped, tag = 'scoped memory for tpu_custom_call.1']
    #allocation6 [shape = 'u8[1024]{0}', space=vmem, size = 0x400, scoped, tag = 'output window, operand 1']
    #allocation7 [shape = 's32[2]{0}', space=sflag, size = 0x8, scoped, tag = 'scoped memory for tpu_custom_call.1']
    %18 = vsyncpa [#allocation5], 0
    %s19 = scalar_lea.sflag [#allocation5], 1
    %20 = vsyncpa %s19, 0
    %21 = vsyncpa [#allocation7], 0
    %s22 = scalar_lea.sflag [#allocation7], 1
    %23 = vsyncpa %s22, 0
    loop: start=0, step=1, limit=4
    $region2: #{tpu_custom_call.1} parent=1 // loop_pre_header
      _
    $region3: #{tpu_custom_call.1} parent=1 // loop_header
      %s25 = sphi 0, %s29
      %p26 = scmp.ge.s32.totalorder %s25, 4
      %s35 = sphi 0, %s37
      %s38 = sphi 0, %s35
      %s39 = sphi 0, %s38
      %s55 = sphi 0, %s39
      %s61 = sphi 0, %s63
      %s64 = sphi 0, %s61
      %s65 = sphi 0, %s64
      %s81 = sphi 0, %s65
      %s87 = sphi 0, %s89
      %s90 = sphi 0, %s87
      %s91 = sphi 0, %s90
      %s107 = sphi 0, %s91
      %s113 = sphi 0, %s115
      %s116 = sphi 0, %s113
      %s117 = sphi 0, %s116
      %s133 = sphi 0, %s117
      %s139 = sphi 0, %s141
      %s142 = sphi 0, %s139
      %s143 = sphi 0, %s142
      %s159 = sphi 0, %s143
      %s163 = sphi 0, %s163
      %s165 = sphi 0, %s163
      %s166 = sphi 0, %s165
      %s180 = sphi 0, %s166
      %s184 = sphi 0, %s184
      %s186 = sphi 0, %s184
      %s187 = sphi 0, %s186
      %s201 = sphi 0, %s187
      %s205 = sphi 0, %s205
      %s207 = sphi 0, %s205
      %s208 = sphi 0, %s207
      %s222 = sphi 0, %s208
      %s226 = sphi 0, %s226
      %s228 = sphi 0, %s226
      %s229 = sphi 0, %s228
      %s243 = sphi 0, %s229
      %s249 = sphi 0, %s251
      %s252 = sphi 0, %s249
      %s253 = sphi 0, %s252
      %s269 = sphi 0, %s253
      %s275 = sphi 0, %s277
      %s278 = sphi 0, %s275
      %s279 = sphi 0, %s278
      %s295 = sphi 0, %s279
    $region4: #{tpu_custom_call.1} parent=1 // loop_header_branch
      %28 = sbr.rel (%p26) target = $region8
    $region5: #{tpu_custom_call.1} parent=1 // loop_body
      %s30 = ssub.s32 %s25, 1
      %s31 = ssub.s32 %s25, 2
      %s32 = sadd.s32 %s25, 1
      %s33 = ssub.s32 %s25, %s32
      %p34 = scmp.eq.s32.totalorder %s33, 0
      %s36 = sadd.s32 %s35, 1
      %s37 = scalar_select %p34, %s35, %s36
      %p40 = pneg %p34
      %p41 = scmp.eq.s32.totalorder %s25, 1
      %p42 = por %p40, %p41
      %p43 = scmp.ne.s32.totalorder %s35, %s38
      %p44 = scmp.eq.s32.totalorder %s25, 0
      %p45 = por %p43, %p44
      %p46 = scmp.ne.s32.totalorder %s35, %s38
      %p47 = scmp.eq.s32.totalorder %s30, 1
      %p48 = por %p46, %p47
      %p49 = scmp.ne.s32.totalorder %s38, %s39
      %p50 = scmp.eq.s32.totalorder %s30, 0
      %p51 = por %p49, %p50
      %p52 = scmp.ne.s32.totalorder %s38, %s39
      %p53 = scmp.eq.s32.totalorder %s31, 1
      %p54 = por %p52, %p53
      %p56 = scmp.ne.s32.totalorder %s39, %s55
      %p57 = scmp.eq.s32.totalorder %s31, 0
      %p58 = por %p56, %p57
      %s59 = ssub.s32 %s25, %s32
      %p60 = scmp.eq.s32.totalorder %s59, 0
      %s62 = sadd.s32 %s61, 1
      %s63 = scalar_select %p60, %s61, %s62
      %p66 = pneg %p60
      %p67 = scmp.eq.s32.totalorder %s25, 1
      %p68 = por %p66, %p67
      %p69 = scmp.ne.s32.totalorder %s61, %s64
      %p70 = scmp.eq.s32.totalorder %s25, 0
      %p71 = por %p69, %p70
      %p72 = scmp.ne.s32.totalorder %s61, %s64
      %p73 = scmp.eq.s32.totalorder %s30, 1
      %p74 = por %p72, %p73
      %p75 = scmp.ne.s32.totalorder %s64, %s65
      %p76 = scmp.eq.s32.totalorder %s30, 0
      %p77 = por %p75, %p76
      %p78 = scmp.ne.s32.totalorder %s64, %s65
      %p79 = scmp.eq.s32.totalorder %s31, 1
      %p80 = por %p78, %p79
      %p82 = scmp.ne.s32.totalorder %s65, %s81
      %p83 = scmp.eq.s32.totalorder %s31, 0
      %p84 = por %p82, %p83
      %s85 = ssub.s32 %s25, %s32
      %p86 = scmp.eq.s32.totalorder %s85, 0
      %s88 = sadd.s32 %s87, 1
      %s89 = scalar_select %p86, %s87, %s88
      %p92 = pneg %p86
      %p93 = scmp.eq.s32.totalorder %s25, 1
      %p94 = por %p92, %p93
      %p95 = scmp.ne.s32.totalorder %s87, %s90
      %p96 = scmp.eq.s32.totalorder %s25, 0
      %p97 = por %p95, %p96
      %p98 = scmp.ne.s32.totalorder %s87, %s90
      %p99 = scmp.eq.s32.totalorder %s30, 1
      %p100 = por %p98, %p99
      %p101 = scmp.ne.s32.totalorder %s90, %s91
      %p102 = scmp.eq.s32.totalorder %s30, 0
      %p103 = por %p101, %p102
      %p104 = scmp.ne.s32.totalorder %s90, %s91
      %p105 = scmp.eq.s32.totalorder %s31, 1
      %p106 = por %p104, %p105
      %p108 = scmp.ne.s32.totalorder %s91, %s107
      %p109 = scmp.eq.s32.totalorder %s31, 0
      %p110 = por %p108, %p109
      %s111 = ssub.s32 %s25, %s32
      %p112 = scmp.eq.s32.totalorder %s111, 0
      %s114 = sadd.s32 %s113, 1
      %s115 = scalar_select %p112, %s113, %s114
      %p118 = pneg %p112
      %p119 = scmp.eq.s32.totalorder %s25, 1
      %p120 = por %p118, %p119
      %p121 = scmp.ne.s32.totalorder %s113, %s116
      %p122 = scmp.eq.s32.totalorder %s25, 0
      %p123 = por %p121, %p122
      %p124 = scmp.ne.s32.totalorder %s113, %s116
      %p125 = scmp.eq.s32.totalorder %s30, 1
      %p126 = por %p124, %p125
      %p127 = scmp.ne.s32.totalorder %s116, %s117
      %p128 = scmp.eq.s32.totalorder %s30, 0
      %p129 = por %p127, %p128
      %p130 = scmp.ne.s32.totalorder %s116, %s117
      %p131 = scmp.eq.s32.totalorder %s31, 1
      %p132 = por %p130, %p131
      %p134 = scmp.ne.s32.totalorder %s117, %s133
      %p135 = scmp.eq.s32.totalorder %s31, 0
      %p136 = por %p134, %p135
      %s137 = ssub.s32 %s25, %s32
      %p138 = scmp.eq.s32.totalorder %s137, 0
      %s140 = sadd.s32 %s139, 1
      %s141 = scalar_select %p138, %s139, %s140
      %p144 = pneg %p138
      %p145 = scmp.eq.s32.totalorder %s25, 1
      %p146 = por %p144, %p145
      %p147 = scmp.ne.s32.totalorder %s139, %s142
      %p148 = scmp.eq.s32.totalorder %s25, 0
      %p149 = por %p147, %p148
      %p150 = scmp.ne.s32.totalorder %s139, %s142
      %p151 = scmp.eq.s32.totalorder %s30, 1
      %p152 = por %p150, %p151
      %p153 = scmp.ne.s32.totalorder %s142, %s143
      %p154 = scmp.eq.s32.totalorder %s30, 0
      %p155 = por %p153, %p154
      %p156 = scmp.ne.s32.totalorder %s142, %s143
      %p157 = scmp.eq.s32.totalorder %s31, 1
      %p158 = por %p156, %p157
      %p160 = scmp.ne.s32.totalorder %s143, %s159
      %p161 = scmp.eq.s32.totalorder %s31, 0
      %p162 = por %p160, %p161
      %s164 = sadd.s32 %s163, 1
      %p167 = scmp.eq.s32.totalorder %s25, 1
      %p168 = scmp.ne.s32.totalorder %s163, %s165
      %p169 = scmp.eq.s32.totalorder %s25, 0
      %p170 = por %p168, %p169
      %p171 = scmp.ne.s32.totalorder %s163, %s165
      %p172 = scmp.eq.s32.totalorder %s30, 1
      %p173 = por %p171, %p172
      %p174 = scmp.ne.s32.totalorder %s165, %s166
      %p175 = scmp.eq.s32.totalorder %s30, 0
      %p176 = por %p174, %p175
      %p177 = scmp.ne.s32.totalorder %s165, %s166
      %p178 = scmp.eq.s32.totalorder %s31, 1
      %p179 = por %p177, %p178
      %p181 = scmp.ne.s32.totalorder %s166, %s180
      %p182 = scmp.eq.s32.totalorder %s31, 0
      %p183 = por %p181, %p182
      %s185 = sadd.s32 %s184, 1
      %p188 = scmp.eq.s32.totalorder %s25, 1
      %p189 = scmp.ne.s32.totalorder %s184, %s186
      %p190 = scmp.eq.s32.totalorder %s25, 0
      %p191 = por %p189, %p190
      %p192 = scmp.ne.s32.totalorder %s184, %s186
      %p193 = scmp.eq.s32.totalorder %s30, 1
      %p194 = por %p192, %p193
      %p195 = scmp.ne.s32.totalorder %s186, %s187
      %p196 = scmp.eq.s32.totalorder %s30, 0
      %p197 = por %p195, %p196
      %p198 = scmp.ne.s32.totalorder %s186, %s187
      %p199 = scmp.eq.s32.totalorder %s31, 1
      %p200 = por %p198, %p199
      %p202 = scmp.ne.s32.totalorder %s187, %s201
      %p203 = scmp.eq.s32.totalorder %s31, 0
      %p204 = por %p202, %p203
      %s206 = sadd.s32 %s205, 1
      %p209 = scmp.eq.s32.totalorder %s25, 1
      %p210 = scmp.ne.s32.totalorder %s205, %s207
      %p211 = scmp.eq.s32.totalorder %s25, 0
      %p212 = por %p210, %p211
      %p213 = scmp.ne.s32.totalorder %s205, %s207
      %p214 = scmp.eq.s32.totalorder %s30, 1
      %p215 = por %p213, %p214
      %p216 = scmp.ne.s32.totalorder %s207, %s208
      %p217 = scmp.eq.s32.totalorder %s30, 0
      %p218 = por %p216, %p217
      %p219 = scmp.ne.s32.totalorder %s207, %s208
      %p220 = scmp.eq.s32.totalorder %s31, 1
      %p221 = por %p219, %p220
      %p223 = scmp.ne.s32.totalorder %s208, %s222
      %p224 = scmp.eq.s32.totalorder %s31, 0
      %p225 = por %p223, %p224
      %s227 = sadd.s32 %s226, 1
      %p230 = scmp.eq.s32.totalorder %s25, 1
      %p231 = scmp.ne.s32.totalorder %s226, %s228
      %p232 = scmp.eq.s32.totalorder %s25, 0
      %p233 = por %p231, %p232
      %p234 = scmp.ne.s32.totalorder %s226, %s228
      %p235 = scmp.eq.s32.totalorder %s30, 1
      %p236 = por %p234, %p235
      %p237 = scmp.ne.s32.totalorder %s228, %s229
      %p238 = scmp.eq.s32.totalorder %s30, 0
      %p239 = por %p237, %p238
      %p240 = scmp.ne.s32.totalorder %s228, %s229
      %p241 = scmp.eq.s32.totalorder %s31, 1
      %p242 = por %p240, %p241
      %p244 = scmp.ne.s32.totalorder %s229, %s243
      %p245 = scmp.eq.s32.totalorder %s31, 0
      %p246 = por %p244, %p245
      %s247 = ssub.s32 %s25, %s32
      %p248 = scmp.eq.s32.totalorder %s247, 0
      %s250 = sadd.s32 %s249, 1
      %s251 = scalar_select %p248, %s249, %s250
      %p254 = pneg %p248
      %p255 = scmp.eq.s32.totalorder %s25, 1
      %p256 = por %p254, %p255
      %p257 = scmp.ne.s32.totalorder %s249, %s252
      %p258 = scmp.eq.s32.totalorder %s25, 0
      %p259 = por %p257, %p258
      %p260 = scmp.ne.s32.totalorder %s249, %s252
      %p261 = scmp.eq.s32.totalorder %s30, 1
      %p262 = por %p260, %p261
      %p263 = scmp.ne.s32.totalorder %s252, %s253
      %p264 = scmp.eq.s32.totalorder %s30, 0
      %p265 = por %p263, %p264
      %p266 = scmp.ne.s32.totalorder %s252, %s253
      %p267 = scmp.eq.s32.totalorder %s31, 1
      %p268 = por %p266, %p267
      %p270 = scmp.ne.s32.totalorder %s253, %s269
      %p271 = scmp.eq.s32.totalorder %s31, 0
      %p272 = por %p270, %p271
      %s273 = ssub.s32 %s25, %s32
      %p274 = scmp.eq.s32.totalorder %s273, 0
      %s276 = sadd.s32 %s275, 1
      %s277 = scalar_select %p274, %s275, %s276
      %p280 = pneg %p274
      %p281 = scmp.eq.s32.totalorder %s25, 1
      %p282 = por %p280, %p281
      %p283 = scmp.ne.s32.totalorder %s275, %s278
      %p284 = scmp.eq.s32.totalorder %s25, 0
      %p285 = por %p283, %p284
      %p286 = scmp.ne.s32.totalorder %s275, %s278
      %p287 = scmp.eq.s32.totalorder %s30, 1
      %p288 = por %p286, %p287
      %p289 = scmp.ne.s32.totalorder %s278, %s279
      %p290 = scmp.eq.s32.totalorder %s30, 0
      %p291 = por %p289, %p290
      %p292 = scmp.ne.s32.totalorder %s278, %s279
      %p293 = scmp.eq.s32.totalorder %s31, 1
      %p294 = por %p292, %p293
      %p296 = scmp.ne.s32.totalorder %s279, %s295
      %p297 = scmp.eq.s32.totalorder %s31, 0
      %p298 = por %p296, %p297
      %p299 = scmp.le.s32.totalorder 1, %s25
      %p300 = scmp.lt.s32.totalorder %s25, 3
      %p301 = pnand %p299, %p300
      %p302 = pneg %p301
      // Predicated region
      $region9: #{tpu_custom_call.1} parent=5 // pred_check
        _
      $region10: #{tpu_custom_call.1} parent=5 // pred_check_branch
        %304 = sbr.rel (%p301) target = $region12
      $region11: #{tpu_custom_call.1} parent=5 // pred_region
        %s305 = ssub.s32 %s25, 1
        // Predicated region
        $region13: #{tpu_custom_call.1} parent=11 // pred_check
          %p306 = pneg %p176
        $region14: #{tpu_custom_call.1} parent=11 // pred_check_branch
          %308 = sbr.rel (%p306) target = $region16
        $region15: #{tpu_custom_call.1} parent=11 // pred_region
          _
        $region16: #{tpu_custom_call.1} parent=11 // pred_fallthru
          _
        // Predicated region
        $region17: #{tpu_custom_call.1} parent=11 // pred_check
          %p309 = pneg %p197
        $region18: #{tpu_custom_call.1} parent=11 // pred_check_branch
          %311 = sbr.rel (%p309) target = $region20
        $region19: #{tpu_custom_call.1} parent=11 // pred_region
          _
        $region20: #{tpu_custom_call.1} parent=11 // pred_fallthru
          _
        // Predicated region
        $region21: #{tpu_custom_call.1} parent=11 // pred_check
          %p312 = pneg %p218
        $region22: #{tpu_custom_call.1} parent=11 // pred_check_branch
          %314 = sbr.rel (%p312) target = $region24
        $region23: #{tpu_custom_call.1} parent=11 // pred_region
          _
        $region24: #{tpu_custom_call.1} parent=11 // pred_fallthru
          _
        // Predicated region
        $region25: #{tpu_custom_call.1} parent=11 // pred_check
          %p315 = pneg %p239
        $region26: #{tpu_custom_call.1} parent=11 // pred_check_branch
          %317 = sbr.rel (%p315) target = $region28
        $region27: #{tpu_custom_call.1} parent=11 // pred_region
          _
        $region28: #{tpu_custom_call.1} parent=11 // pred_fallthru
          _
      $region12: #{tpu_custom_call.1} parent=5 // pred_fallthru
        _
      %p318 = scmp.lt.s32.totalorder %s25, 2
      // Predicated region
      $region29: #{tpu_custom_call.1} parent=5 // pred_check
        %p319 = pneg %p318
      $region30: #{tpu_custom_call.1} parent=5 // pred_check_branch
        %321 = sbr.rel (%p319) target = $region32
      $region31: #{tpu_custom_call.1} parent=5 // pred_region
        // Predicated region
        $region33: #{tpu_custom_call.1} parent=31 // pred_check
          %p322 = pneg %p45
        $region34: #{tpu_custom_call.1} parent=31 // pred_check_branch
          %324 = sbr.rel (%p322) target = $region36
        $region35: #{tpu_custom_call.1} parent=31 // pred_region
          %p325 = scmp.lt.s32.totalorder %s25, 1
          %s326 = scalar_select %p325, %s25, 1
          %s327 = smul.addr %s326, 4
          %s328 = smul.addr %s327, 8
          %s329 = scalar_lea.vmem %s1, %s328
        $region36: #{tpu_custom_call.1} parent=31 // pred_fallthru
          _
        // Predicated region
        $region37: #{tpu_custom_call.1} parent=31 // pred_check
          %p330 = pneg %p71
        $region38: #{tpu_custom_call.1} parent=31 // pred_check_branch
          %332 = sbr.rel (%p330) target = $region40
        $region39: #{tpu_custom_call.1} parent=31 // pred_region
          %p333 = scmp.lt.s32.totalorder %s25, 1
          %s334 = scalar_select %p333, %s25, 1
          %s335 = smul.addr %s334, 16
          %s336 = smul.addr %s335, 8
          %s337 = scalar_lea.vmem %s2, %s336
        $region40: #{tpu_custom_call.1} parent=31 // pred_fallthru
          _
        // Predicated region
        $region41: #{tpu_custom_call.1} parent=31 // pred_check
          %p338 = pneg %p97
        $region42: #{tpu_custom_call.1} parent=31 // pred_check_branch
          %340 = sbr.rel (%p338) target = $region44
        $region43: #{tpu_custom_call.1} parent=31 // pred_region
          %p341 = scmp.lt.s32.totalorder %s25, 1
          %s342 = scalar_select %p341, %s25, 1
          %s343 = smul.addr %s342, 2
          %s344 = smul.addr %s343, 8
          %s345 = scalar_lea.vmem %s3, %s344
        $region44: #{tpu_custom_call.1} parent=31 // pred_fallthru
          _
        // Predicated region
        $region45: #{tpu_custom_call.1} parent=31 // pred_check
          %p346 = pneg %p123
        $region46: #{tpu_custom_call.1} parent=31 // pred_check_branch
          %348 = sbr.rel (%p346) target = $region48
        $region47: #{tpu_custom_call.1} parent=31 // pred_region
          %p349 = scmp.lt.s32.totalorder %s25, 1
          %s350 = scalar_select %p349, %s25, 1
          %s351 = smul.addr %s350, 8
          %s352 = scalar_lea.vmem %s4, %s351
        $region48: #{tpu_custom_call.1} parent=31 // pred_fallthru
          _
        // Predicated region
        $region49: #{tpu_custom_call.1} parent=31 // pred_check
          %p353 = pneg %p149
        $region50: #{tpu_custom_call.1} parent=31 // pred_check_branch
          %355 = sbr.rel (%p353) target = $region52
        $region51: #{tpu_custom_call.1} parent=31 // pred_region
          %p356 = scmp.lt.s32.totalorder %s25, 1
          %s357 = scalar_select %p356, %s25, 1
          %s358 = scalar_lea.vmem %s5, %s357
        $region52: #{tpu_custom_call.1} parent=31 // pred_fallthru
          _
      $region32: #{tpu_custom_call.1} parent=5 // pred_fallthru
        _
      %p359 = scmp.le.s32.totalorder 1, %s25
      %p360 = scmp.lt.s32.totalorder %s25, 3
      %p361 = pnand %p359, %p360
      %p362 = pneg %p361
      // Predicated region
      $region53: #{tpu_custom_call.1} parent=5 // pred_check
        _
      $region54: #{tpu_custom_call.1} parent=5 // pred_check_branch
        %364 = sbr.rel (%p361) target = $region56
      $region55: #{tpu_custom_call.1} parent=5 // pred_region
        %s365 = ssub.s32 %s25, 1
        %p366 = scmp.lt.s32.totalorder %s30, 1
        %s367 = scalar_select %p366, %s30, 1
        %s368 = smul.addr %s367, 4
        %s369 = smul.addr %s368, 8
        %s370 = scalar_lea.vmem %s1, %s369
        %p371 = pneg %p51
        %p372 = pneg %p48
        %p373 = scmp.lt.s32.totalorder %s30, 1
        %s374 = scalar_select %p373, %s30, 1
        %s375 = smul.addr %s374, 16
        %s376 = smul.addr %s375, 8
        %s377 = scalar_lea.vmem %s2, %s376
        %p378 = pneg %p77
        %p379 = pneg %p74
        %p380 = scmp.lt.s32.totalorder %s30, 1
        %s381 = scalar_select %p380, %s30, 1
        %s382 = smul.addr %s381, 2
        %s383 = smul.addr %s382, 8
        %s384 = scalar_lea.vmem %s3, %s383
        %p385 = pneg %p103
        %p386 = pneg %p100
        %p387 = scmp.lt.s32.totalorder %s30, 1
        %s388 = scalar_select %p387, %s30, 1
        %s389 = smul.addr %s388, 8
        %s390 = scalar_lea.vmem %s4, %s389
        %p391 = pneg %p129
        %p392 = pneg %p126
        %p393 = scmp.lt.s32.totalorder %s30, 1
        %s394 = scalar_select %p393, %s30, 1
        %s395 = scalar_lea.vmem %s5, %s394
        %p396 = pneg %p155
        %p397 = pneg %p152
        %p398 = pneg %p176
        %p399 = pneg %p173
        %p400 = pneg %p197
        %p401 = pneg %p194
        %p402 = pneg %p218
        %p403 = pneg %p215
        %p404 = pneg %p239
        %p405 = pneg %p236
        %p406 = pneg %p265
        %p407 = pneg %p262
        %s408 = sand.u32 %s252, 1
        %s409 = scalar_lea.sflag [#allocation5], %s408
        %s410 = sand.u32 %s252, 1
        %s411 = scalar_lea.vmem [#allocation4], %s410
        %p412 = pneg %p291
        %p413 = pneg %p288
        %s414 = sand.u32 %s278, 1
        %s415 = scalar_lea.sflag [#allocation7], %s414
        %s416 = sand.u32 %s278, 1
        %s417 = scalar_lea.vmem [#allocation6], %s416
        %p418 = scmp.lt.s32.totalorder %s30, 1
        %s419 = scalar_select %p418, %s30, 1
        %s420 = smul.addr %s419, 4
        %s421 = smul.addr %s420, 8
        %s422 = scalar_lea.vmem %s1, %s421
        %p423 = scmp.lt.s32.totalorder %s30, 1
        %s424 = scalar_select %p423, %s30, 1
        %s425 = smul.addr %s424, 16
        %s426 = smul.addr %s425, 8
        %s427 = scalar_lea.vmem %s2, %s426
        %p428 = scmp.lt.s32.totalorder %s30, 1
        %s429 = scalar_select %p428, %s30, 1
        %s430 = smul.addr %s429, 2
        %s431 = smul.addr %s430, 8
        %s432 = scalar_lea.vmem %s3, %s431
        %p433 = scmp.lt.s32.totalorder %s30, 1
        %s434 = scalar_select %p433, %s30, 1
        %s435 = smul.addr %s434, 8
        %s436 = scalar_lea.vmem %s4, %s435
        %p437 = scmp.lt.s32.totalorder %s30, 1
        %s438 = scalar_select %p437, %s30, 1
        %s439 = scalar_lea.vmem %s5, %s438
        %v440 = vld [vmem:[%s422] sm:$0xff]
        %v441 = vld [vmem:[%s422 + $0x8] sm:$0xff]
        %v442 = vld [vmem:[%s422 + $0x10] sm:$0xff]
        %v443 = vld [vmem:[%s422 + $0x18] sm:$0xff]
        %v444 = vld [vmem:[%s7] sm:$0xff]
        %v445 = vld [vmem:[%s7 + $0x8] sm:$0xff]
        %vm446 = vcmask 261120
        %v448 = vsel %vm446, %v444, 0
        %v451 = vsel %vm446, %v445, 0
        %453 = vmatprep.subr.mxu0 0.0
        %454 = vmatpush1.msra.mxu0 %v440
        %455 = vmatprep.subr.mxu0 0.0
        %456 = vmatpush1.msra.mxu0 %v441
        %457 = vmatprep.subr.mxu0 0.0
        %458 = vmatpush1.msra.mxu0 %v442
        %459 = vmatprep.subr.mxu0 0.0
        %460 = vmatpush1.msra.mxu0 %v443
        %461 = vmatprep.subr.mxu0 0.0
        %462 = vmatpush1.msra.mxu0 0.0
        %463 = vmatprep.subr.mxu0 0.0
        %464 = vmatpush1.msra.mxu0 0.0
        %465 = vmatprep.subr.mxu0 0.0
        %466 = vmatpush1.msra.mxu0 0.0
        %467 = vmatprep.subr.mxu0 0.0
        %468 = vmatpush1.msra.mxu0 0.0
        %469 = vmatprep.subr.mxu0 0.0
        %470 = vmatpush1.msra.mxu0 0.0
        %471 = vmatprep.subr.mxu0 0.0
        %472 = vmatpush1.msra.mxu0 0.0
        %473 = vmatprep.subr.mxu0 0.0
        %474 = vmatpush1.msra.mxu0 0.0
        %475 = vmatprep.subr.mxu0 0.0
        %476 = vmatpush1.msra.mxu0 0.0
        %477 = vmatprep.subr.mxu0 0.0
        %478 = vmatpush1.msra.mxu0 0.0
        %479 = vmatprep.subr.mxu0 0.0
        %480 = vmatpush1.msra.mxu0 0.0
        %481 = vmatprep.subr.mxu0 0.0
        %482 = vmatpush1.msra.mxu0 0.0
        %483 = vmatprep.subr.mxu0 0.0
        %484 = vmatpush1.msra.mxu0 0.0
        %485 = vmatprep.subr.mxu0 0.0
        %486 = vmatpush1.msra.mxu0 0.0
        %487 = vmatprep.subr.mxu0 0.0
        %488 = vmatpush1.msra.mxu0 0.0
        %489 = vmatprep.subr.mxu0 0.0
        %490 = vmatpush1.msra.mxu0 0.0
        %491 = vmatprep.subr.mxu0 0.0
        %492 = vmatpush1.msra.mxu0 0.0
        %493 = vmatprep.subr.mxu0 0.0
        %494 = vmatpush1.msra.mxu0 0.0
        %495 = vmatprep.subr.mxu0 0.0
        %496 = vmatpush1.msra.mxu0 0.0
        %497 = vmatprep.subr.mxu0 0.0
        %498 = vmatpush1.msra.mxu0 0.0
        %499 = vmatprep.subr.mxu0 0.0
        %500 = vmatpush1.msra.mxu0 0.0
        %501 = vmatprep.subr.mxu0 0.0
        %502 = vmatpush1.msra.mxu0 0.0
        %503 = vmatprep.subr.mxu0 0.0
        %504 = vmatpush1.msra.mxu0 0.0
        %505 = vmatprep.subr.mxu0 0.0
        %506 = vmatpush1.msra.mxu0 0.0
        %507 = vmatprep.subr.mxu0 0.0
        %508 = vmatpush1.msra.mxu0 0.0
        %509 = vmatprep.subr.mxu0 0.0
        %510 = vmatpush1.msra.mxu0 0.0
        %511 = vmatprep.subr.mxu0 0.0
        %512 = vmatpush1.msra.mxu0 0.0
        %513 = vmatprep.subr.mxu0 0.0
        %514 = vmatpush1.msra.mxu0 0.0
        %515 = vmatprep.subr.mxu0 0.0
        %516 = vmatpush1.msra.mxu0 0.0
        %517 = vmatprep.mubr.f32.mxu0 0.0
        %518 = vmatmul.mubr.f32.gmra.mrb[0].mxu0 %v448
        %v519 = vpop.f32.mrb[0].mxu0
        %v520 = vadd.f32 0.0, %v519
        %v521 = vpop.f32.mrb[0].mxu0
        %522 = vmatprep.mubr.f32.mxu0 0.0
        %523 = vmatmul.mubr.f32.gmra.mrb[0].mxu0 %v451
        %v524 = vpop.f32.mrb[0].mxu0
        %v525 = vadd.f32 0.0, %v524
        %v526 = vpop.f32.mrb[0].mxu0
        %527 = vdwg.mxu0
        %v528 = vld [vmem:[%s8] sm:$0xff]
        %v529 = vld [vmem:[%s8 + $0x8] sm:$0xff]
        %v530 = vld [vmem:[%s436] sm:$0x3f]
        %vm531 = vcmask 48128
        %v533 = vsel %vm531, %v528, 0
        %v536 = vsel %vm531, %v529, 0
        %vm538 = vcmask 1045504
        %v540 = vsel %vm538, %v530, 0
        %542 = vmatprep.subr.mxu0 0.0
        %543 = vmatpush1.msra.mxu0 %v540
        %544 = vmatprep.subr.mxu0 0.0
        %545 = vmatpush1.msra.mxu0 0.0
        %546 = vmatprep.subr.mxu0 0.0
        %547 = vmatpush1.msra.mxu0 0.0
        %548 = vmatprep.subr.mxu0 0.0
        %549 = vmatpush1.msra.mxu0 0.0
        %550 = vmatprep.subr.mxu0 0.0
        %551 = vmatpush1.msra.mxu0 0.0
        %552 = vmatprep.subr.mxu0 0.0
        %553 = vmatpush1.msra.mxu0 0.0
        %554 = vmatprep.subr.mxu0 0.0
        %555 = vmatpush1.msra.mxu0 0.0
        %556 = vmatprep.subr.mxu0 0.0
        %557 = vmatpush1.msra.mxu0 0.0
        %558 = vmatprep.subr.mxu0 0.0
        %559 = vmatpush1.msra.mxu0 0.0
        %560 = vmatprep.subr.mxu0 0.0
        %561 = vmatpush1.msra.mxu0 0.0
        %562 = vmatprep.subr.mxu0 0.0
        %563 = vmatpush1.msra.mxu0 0.0
        %564 = vmatprep.subr.mxu0 0.0
        %565 = vmatpush1.msra.mxu0 0.0
        %566 = vmatprep.subr.mxu0 0.0
        %567 = vmatpush1.msra.mxu0 0.0
        %568 = vmatprep.subr.mxu0 0.0
        %569 = vmatpush1.msra.mxu0 0.0
        %570 = vmatprep.subr.mxu0 0.0
        %571 = vmatpush1.msra.mxu0 0.0
        %572 = vmatprep.subr.mxu0 0.0
        %573 = vmatpush1.msra.mxu0 0.0
        %574 = vmatprep.subr.mxu0 0.0
        %575 = vmatpush1.msra.mxu0 0.0
        %576 = vmatprep.subr.mxu0 0.0
        %577 = vmatpush1.msra.mxu0 0.0
        %578 = vmatprep.subr.mxu0 0.0
        %579 = vmatpush1.msra.mxu0 0.0
        %580 = vmatprep.subr.mxu0 0.0
        %581 = vmatpush1.msra.mxu0 0.0
        %582 = vmatprep.subr.mxu0 0.0
        %583 = vmatpush1.msra.mxu0 0.0
        %584 = vmatprep.subr.mxu0 0.0
        %585 = vmatpush1.msra.mxu0 0.0
        %586 = vmatprep.subr.mxu0 0.0
        %587 = vmatpush1.msra.mxu0 0.0
        %588 = vmatprep.subr.mxu0 0.0
        %589 = vmatpush1.msra.mxu0 0.0
        %590 = vmatprep.subr.mxu0 0.0
        %591 = vmatpush1.msra.mxu0 0.0
        %592 = vmatprep.subr.mxu0 0.0
        %593 = vmatpush1.msra.mxu0 0.0
        %594 = vmatprep.subr.mxu0 0.0
        %595 = vmatpush1.msra.mxu0 0.0
        %596 = vmatprep.subr.mxu0 0.0
        %597 = vmatpush1.msra.mxu0 0.0
        %598 = vmatprep.subr.mxu0 0.0
        %599 = vmatpush1.msra.mxu0 0.0
        %600 = vmatprep.subr.mxu0 0.0
        %601 = vmatpush1.msra.mxu0 0.0
        %602 = vmatprep.subr.mxu0 0.0
        %603 = vmatpush1.msra.mxu0 0.0
        %604 = vmatprep.subr.mxu0 0.0
        %605 = vmatpush1.msra.mxu0 0.0
        %606 = vmatprep.mubr.f32.mxu0 0.0
        %607 = vmatmul.mubr.f32.gmra.mrb[0].mxu0 %v533
        %v608 = vpop.f32.mrb[0].mxu0
        %v609 = vadd.f32 0.0, %v608
        %v610 = vpop.f32.mrb[0].mxu0
        %611 = vmatprep.mubr.f32.mxu0 0.0
        %612 = vmatmul.mubr.f32.gmra.mrb[0].mxu0 %v536
        %v613 = vpop.f32.mrb[0].mxu0
        %v614 = vadd.f32 0.0, %v613
        %v615 = vpop.f32.mrb[0].mxu0
        %616 = vdwg.mxu0
        %618 = vset.pattern.permute.xlu0 0
        %619 = vperm.xlu0 %618, %v520
        %v620 = vpop.permute.xlu0 %619
        %623 = vset.pattern.permute.xlu0 0
        %624 = vperm.xlu0 %623, %v525
        %v625 = vpop.permute.xlu0 %624
        %v627 = vadd.f32 %v620, %v609
        %v628 = vadd.f32 %v625, %v614
        %v629 = vld [vmem:[%s432] sm:$0xff]
        %v630 = vld [vmem:[%s432 + $0x8] sm:$0xff]
        %v631 = vadd.f32 %v627, %v629
        %v632 = vadd.f32 %v628, %v630
        %v633 = vtanh.pop %v631
        %v634 = vtanh.pop %v632
        %v635 = vld [vmem:[%s9] sm:$0x1]
        %vm636 = vcmask 130048
        %v638 = vsel %vm636, %v635, 0
        %640 = vmatprep.subr.mxu0 0.0
        %641 = vmatpush1.msra.mxu0 %v633
        %642 = vmatprep.subr.mxu0 0.0
        %643 = vmatpush1.msra.mxu0 %v634
        %644 = vmatprep.subr.mxu0 0.0
        %645 = vmatpush1.msra.mxu0 0.0
        %646 = vmatprep.subr.mxu0 0.0
        %647 = vmatpush1.msra.mxu0 0.0
        %648 = vmatprep.subr.mxu0 0.0
        %649 = vmatpush1.msra.mxu0 0.0
        %650 = vmatprep.subr.mxu0 0.0
        %651 = vmatpush1.msra.mxu0 0.0
        %652 = vmatprep.subr.mxu0 0.0
        %653 = vmatpush1.msra.mxu0 0.0
        %654 = vmatprep.subr.mxu0 0.0
        %655 = vmatpush1.msra.mxu0 0.0
        %656 = vmatprep.subr.mxu0 0.0
        %657 = vmatpush1.msra.mxu0 0.0
        %658 = vmatprep.subr.mxu0 0.0
        %659 = vmatpush1.msra.mxu0 0.0
        %660 = vmatprep.subr.mxu0 0.0
        %661 = vmatpush1.msra.mxu0 0.0
        %662 = vmatprep.subr.mxu0 0.0
        %663 = vmatpush1.msra.mxu0 0.0
        %664 = vmatprep.subr.mxu0 0.0
        %665 = vmatpush1.msra.mxu0 0.0
        %666 = vmatprep.subr.mxu0 0.0
        %667 = vmatpush1.msra.mxu0 0.0
        %668 = vmatprep.subr.mxu0 0.0
        %669 = vmatpush1.msra.mxu0 0.0
        %670 = vmatprep.subr.mxu0 0.0
        %671 = vmatpush1.msra.mxu0 0.0
        %672 = vmatprep.subr.mxu0 0.0
        %673 = vmatpush1.msra.mxu0 0.0
        %674 = vmatprep.subr.mxu0 0.0
        %675 = vmatpush1.msra.mxu0 0.0
        %676 = vmatprep.subr.mxu0 0.0
        %677 = vmatpush1.msra.mxu0 0.0
        %678 = vmatprep.subr.mxu0 0.0
        %679 = vmatpush1.msra.mxu0 0.0
        %680 = vmatprep.subr.mxu0 0.0
        %681 = vmatpush1.msra.mxu0 0.0
        %682 = vmatprep.subr.mxu0 0.0
        %683 = vmatpush1.msra.mxu0 0.0
        %684 = vmatprep.subr.mxu0 0.0
        %685 = vmatpush1.msra.mxu0 0.0
        %686 = vmatprep.subr.mxu0 0.0
        %687 = vmatpush1.msra.mxu0 0.0
        %688 = vmatprep.subr.mxu0 0.0
        %689 = vmatpush1.msra.mxu0 0.0
        %690 = vmatprep.subr.mxu0 0.0
        %691 = vmatpush1.msra.mxu0 0.0
        %692 = vmatprep.subr.mxu0 0.0
        %693 = vmatpush1.msra.mxu0 0.0
        %694 = vmatprep.subr.mxu0 0.0
        %695 = vmatpush1.msra.mxu0 0.0
        %696 = vmatprep.subr.mxu0 0.0
        %697 = vmatpush1.msra.mxu0 0.0
        %698 = vmatprep.subr.mxu0 0.0
        %699 = vmatpush1.msra.mxu0 0.0
        %700 = vmatprep.subr.mxu0 0.0
        %701 = vmatpush1.msra.mxu0 0.0
        %702 = vmatprep.subr.mxu0 0.0
        %703 = vmatpush1.msra.mxu0 0.0
        %704 = vmatprep.mubr.f32.mxu0 0.0
        %705 = vmatmul.mubr.f32.gmra.mrb[0].mxu0 %v638
        %v706 = vpop.f32.mrb[0].mxu0
        %v707 = vadd.f32 0.0, %v706
        %v708 = vpop.f32.mrb[0].mxu0
        %709 = vdwg.mxu0
        %v710 = vld [vmem:[%s439] sm:$0x1]
        %v711 = vld [vmem:[%s6] sm:$0xff]
        %v712 = vld [vmem:[%s6 + $0x8] sm:$0xff]
        %v713 = vld [vmem:[%s6 + $0x10] sm:$0xff]
        %v714 = vld [vmem:[%s6 + $0x18] sm:$0xff]
        %v715 = vld [vmem:[%s6 + $0x20] sm:$0xff]
        %v716 = vld [vmem:[%s6 + $0x28] sm:$0xff]
        %v717 = vld [vmem:[%s6 + $0x30] sm:$0xff]
        %v718 = vld [vmem:[%s6 + $0x38] sm:$0xff]
        %v719 = vld [vmem:[%s6 + $0x40] sm:$0xff]
        %v720 = vld [vmem:[%s6 + $0x48] sm:$0xff]
        %v721 = vld [vmem:[%s6 + $0x50] sm:$0xff]
        %v722 = vld [vmem:[%s6 + $0x58] sm:$0xff]
        %v723 = vld [vmem:[%s6 + $0x60] sm:$0xff]
        %v724 = vld [vmem:[%s6 + $0x68] sm:$0xff]
        %v725 = vld [vmem:[%s6 + $0x70] sm:$0xff]
        %v726 = vld [vmem:[%s6 + $0x78] sm:$0xff]
        %v727 = vlaneseq
        %v728 = vand.u32 %v727, 127
        %vm729 = vcmp.lt.s32.totalorder %v728, 8
        %730 = vmatprep.subr.mxu0 0.0
        %731 = vmatpush1.msra.mxu0 %v711
        %732 = vmatprep.subr.mxu0 0.0
        %733 = vmatpush1.msra.mxu0 %v712
        %734 = vmatprep.subr.mxu0 0.0
        %735 = vmatpush1.msra.mxu0 %v713
        %736 = vmatprep.subr.mxu0 0.0
        %737 = vmatpush1.msra.mxu0 %v714
        %738 = vmatprep.subr.mxu0 0.0
        %739 = vmatpush1.msra.mxu0 %v715
        %740 = vmatprep.subr.mxu0 0.0
        %741 = vmatpush1.msra.mxu0 %v716
        %742 = vmatprep.subr.mxu0 0.0
        %743 = vmatpush1.msra.mxu0 %v717
        %744 = vmatprep.subr.mxu0 0.0
        %745 = vmatpush1.msra.mxu0 %v718
        %746 = vmatprep.subr.mxu0 0.0
        %747 = vmatpush1.msra.mxu0 %v719
        %748 = vmatprep.subr.mxu0 0.0
        %749 = vmatpush1.msra.mxu0 %v720
        %750 = vmatprep.subr.mxu0 0.0
        %751 = vmatpush1.msra.mxu0 %v721
        %752 = vmatprep.subr.mxu0 0.0
        %753 = vmatpush1.msra.mxu0 %v722
        %754 = vmatprep.subr.mxu0 0.0
        %755 = vmatpush1.msra.mxu0 %v723
        %756 = vmatprep.subr.mxu0 0.0
        %757 = vmatpush1.msra.mxu0 %v724
        %758 = vmatprep.subr.mxu0 0.0
        %759 = vmatpush1.msra.mxu0 %v725
        %760 = vmatprep.subr.mxu0 0.0
        %761 = vmatpush1.msra.mxu0 %v726
        %762 = vmatprep.subr.mxu0 0.0
        %763 = vmatpush1.msra.mxu0 0.0
        %764 = vmatprep.subr.mxu0 0.0
        %765 = vmatpush1.msra.mxu0 0.0
        %766 = vmatprep.subr.mxu0 0.0
        %767 = vmatpush1.msra.mxu0 0.0
        %768 = vmatprep.subr.mxu0 0.0
        %769 = vmatpush1.msra.mxu0 0.0
        %770 = vmatprep.subr.mxu0 0.0
        %771 = vmatpush1.msra.mxu0 0.0
        %772 = vmatprep.subr.mxu0 0.0
        %773 = vmatpush1.msra.mxu0 0.0
        %774 = vmatprep.subr.mxu0 0.0
        %775 = vmatpush1.msra.mxu0 0.0
        %776 = vmatprep.subr.mxu0 0.0
        %777 = vmatpush1.msra.mxu0 0.0
        %778 = vmatprep.subr.mxu0 0.0
        %779 = vmatpush1.msra.mxu0 0.0
        %780 = vmatprep.subr.mxu0 0.0
        %781 = vmatpush1.msra.mxu0 0.0
        %782 = vmatprep.subr.mxu0 0.0
        %783 = vmatpush1.msra.mxu0 0.0
        %784 = vmatprep.subr.mxu0 0.0
        %785 = vmatpush1.msra.mxu0 0.0
        %786 = vmatprep.subr.mxu0 0.0
        %787 = vmatpush1.msra.mxu0 0.0
        %788 = vmatprep.subr.mxu0 0.0
        %789 = vmatpush1.msra.mxu0 0.0
        %790 = vmatprep.subr.mxu0 0.0
        %791 = vmatpush1.msra.mxu0 0.0
        %792 = vmatprep.subr.mxu0 0.0
        %793 = vmatpush1.msra.mxu0 0.0
        %794 = vmatprep.mubr.f32.mxu0 0.0
        %795 = vmatmul.mubr.f32.gmra.mrb[0].mxu0 %v710
        %v796 = vpop.f32.mrb[0].mxu0
        %v797 = vadd.f32 0.0, %v796
        %v798 = vpop.f32.mrb[0].mxu0
        %799 = vdwg.mxu0
        %vm800 = vcmp.gt.f32.partialorder %v707, 0.0
        %v801 = vsel %vm800, 1.0, 0.0
        %v802 = vmul.f32 %v801, %v797
        %v803 = vsel %vm729, %v802, 0.0
        %v804 = vsub.f32 1.0, %v803
        %v805 = vmax.f32 %v804, 1e-10
        %v806 = vlog2.pop %v805
        %v807 = vmul.f32 %v806, 0.6931472
        %808 = vmatprep.subr.mxu0 0.0
        %809 = vmatpush1.msra.mxu0 %v711
        %810 = vmatprep.subr.mxu0 0.0
        %811 = vmatpush1.msra.mxu0 %v712
        %812 = vmatprep.subr.mxu0 0.0
        %813 = vmatpush1.msra.mxu0 %v713
        %814 = vmatprep.subr.mxu0 0.0
        %815 = vmatpush1.msra.mxu0 %v714
        %816 = vmatprep.subr.mxu0 0.0
        %817 = vmatpush1.msra.mxu0 %v715
        %818 = vmatprep.subr.mxu0 0.0
        %819 = vmatpush1.msra.mxu0 %v716
        %820 = vmatprep.subr.mxu0 0.0
        %821 = vmatpush1.msra.mxu0 %v717
        %822 = vmatprep.subr.mxu0 0.0
        %823 = vmatpush1.msra.mxu0 %v718
        %824 = vmatprep.subr.mxu0 0.0
        %825 = vmatpush1.msra.mxu0 %v719
        %826 = vmatprep.subr.mxu0 0.0
        %827 = vmatpush1.msra.mxu0 %v720
        %828 = vmatprep.subr.mxu0 0.0
        %829 = vmatpush1.msra.mxu0 %v721
        %830 = vmatprep.subr.mxu0 0.0
        %831 = vmatpush1.msra.mxu0 %v722
        %832 = vmatprep.subr.mxu0 0.0
        %833 = vmatpush1.msra.mxu0 %v723
        %834 = vmatprep.subr.mxu0 0.0
        %835 = vmatpush1.msra.mxu0 %v724
        %836 = vmatprep.subr.mxu0 0.0
        %837 = vmatpush1.msra.mxu0 %v725
        %838 = vmatprep.subr.mxu0 0.0
        %839 = vmatpush1.msra.mxu0 %v726
        %840 = vmatprep.subr.mxu0 0.0
        %841 = vmatpush1.msra.mxu0 0.0
        %842 = vmatprep.subr.mxu0 0.0
        %843 = vmatpush1.msra.mxu0 0.0
        %844 = vmatprep.subr.mxu0 0.0
        %845 = vmatpush1.msra.mxu0 0.0
        %846 = vmatprep.subr.mxu0 0.0
        %847 = vmatpush1.msra.mxu0 0.0
        %848 = vmatprep.subr.mxu0 0.0
        %849 = vmatpush1.msra.mxu0 0.0
        %850 = vmatprep.subr.mxu0 0.0
        %851 = vmatpush1.msra.mxu0 0.0
        %852 = vmatprep.subr.mxu0 0.0
        %853 = vmatpush1.msra.mxu0 0.0
        %854 = vmatprep.subr.mxu0 0.0
        %855 = vmatpush1.msra.mxu0 0.0
        %856 = vmatprep.subr.mxu0 0.0
        %857 = vmatpush1.msra.mxu0 0.0
        %858 = vmatprep.subr.mxu0 0.0
        %859 = vmatpush1.msra.mxu0 0.0
        %860 = vmatprep.subr.mxu0 0.0
        %861 = vmatpush1.msra.mxu0 0.0
        %862 = vmatprep.subr.mxu0 0.0
        %863 = vmatpush1.msra.mxu0 0.0
        %864 = vmatprep.subr.mxu0 0.0
        %865 = vmatpush1.msra.mxu0 0.0
        %866 = vmatprep.subr.mxu0 0.0
        %867 = vmatpush1.msra.mxu0 0.0
        %868 = vmatprep.subr.mxu0 0.0
        %869 = vmatpush1.msra.mxu0 0.0
        %870 = vmatprep.subr.mxu0 0.0
        %871 = vmatpush1.msra.mxu0 0.0
        %872 = vmatprep.mubr.f32.mxu0 0.0
        %873 = vmatmul.mubr.f32.gmra.mrb[0].mxu0 %v807
        %v874 = vpop.f32.mrb[0].mxu0
        %v875 = vadd.f32 0.0, %v874
        %v876 = vpop.f32.mrb[0].mxu0
        %877 = vdwg.mxu0
        %v878 = vsub.f32 %v875, %v807
        %v879 = vmul.f32 %v878, 1.442695
        %v880 = vpow.pop %v879
        %v881 = vmul.f32 %v803, %v880
        %vm882 = vcmask 1040384
        %v883 = vsel %vm882, %v881, 0.0
        %884 = vadd.xlane.f32.xlu0 %v883
        %v885 = vpop.xlane.xlu0 %884
        %vm886 = vcmp.eq.s32.totalorder %v728, 7
        %vm887 = vcmp.eq.f32.partialorder %v885, 0.0
        %v888 = vsel %vm887, 1, 0
        %vm889 = vcmp.eq.s32.totalorder %v888, 1
        %vm890 = vmand %vm886, %vm889
        %v891 = vsel %vm890, 1.0, %v881
        %s892 = sld [smem:[#allocation3]]
        %p893 = scmp.eq.s32.totalorder %s892, 1
        %vm894 = vcmp.eq.s32.totalorder %v728, 0
        %v895 = vsel %vm894, 1.0, 0.0
        %s896 = scalar_select %p893, 1, 0
        %v897 = vstv %s896
        %vm898 = vcmp.eq.s32.totalorder %v897, 1
        %v899 = vsel %vm898, %v895, %v891
        %v900 = vld [vmem:[%s427] sm:$0xff]
        %v901 = vld [vmem:[%s427 + $0x8] sm:$0xff]
        %v902 = vld [vmem:[%s427 + $0x10] sm:$0xff]
        %v903 = vld [vmem:[%s427 + $0x18] sm:$0xff]
        %v904 = vld [vmem:[%s427 + $0x20] sm:$0xff]
        %v905 = vld [vmem:[%s427 + $0x28] sm:$0xff]
        %v906 = vld [vmem:[%s427 + $0x30] sm:$0xff]
        %v907 = vld [vmem:[%s427 + $0x38] sm:$0xff]
        %v908 = vld [vmem:[%s427 + $0x40] sm:$0xff]
        %v909 = vld [vmem:[%s427 + $0x48] sm:$0xff]
        %v910 = vld [vmem:[%s427 + $0x50] sm:$0xff]
        %v911 = vld [vmem:[%s427 + $0x58] sm:$0xff]
        %v912 = vld [vmem:[%s427 + $0x60] sm:$0xff]
        %v913 = vld [vmem:[%s427 + $0x68] sm:$0xff]
        %v914 = vld [vmem:[%s427 + $0x70] sm:$0xff]
        %v915 = vld [vmem:[%s427 + $0x78] sm:$0xff]
        %916 = vmatprep.subr.mxu0 0.0
        %917 = vmatpush1.msra.mxu0 %v900
        %918 = vmatprep.subr.mxu0 0.0
        %919 = vmatpush1.msra.mxu0 %v901
        %920 = vmatprep.subr.mxu0 0.0
        %921 = vmatpush1.msra.mxu0 %v902
        %922 = vmatprep.subr.mxu0 0.0
        %923 = vmatpush1.msra.mxu0 %v903
        %924 = vmatprep.subr.mxu0 0.0
        %925 = vmatpush1.msra.mxu0 %v904
        %926 = vmatprep.subr.mxu0 0.0
        %927 = vmatpush1.msra.mxu0 %v905
        %928 = vmatprep.subr.mxu0 0.0
        %929 = vmatpush1.msra.mxu0 %v906
        %930 = vmatprep.subr.mxu0 0.0
        %931 = vmatpush1.msra.mxu0 %v907
        %932 = vmatprep.subr.mxu0 0.0
        %933 = vmatpush1.msra.mxu0 %v908
        %934 = vmatprep.subr.mxu0 0.0
        %935 = vmatpush1.msra.mxu0 %v909
        %936 = vmatprep.subr.mxu0 0.0
        %937 = vmatpush1.msra.mxu0 %v910
        %938 = vmatprep.subr.mxu0 0.0
        %939 = vmatpush1.msra.mxu0 %v911
        %940 = vmatprep.subr.mxu0 0.0
        %941 = vmatpush1.msra.mxu0 %v912
        %942 = vmatprep.subr.mxu0 0.0
        %943 = vmatpush1.msra.mxu0 %v913
        %944 = vmatprep.subr.mxu0 0.0
        %945 = vmatpush1.msra.mxu0 %v914
        %946 = vmatprep.subr.mxu0 0.0
        %947 = vmatpush1.msra.mxu0 %v915
        %948 = vmatprep.subr.mxu0 0.0
        %949 = vmatpush1.msra.mxu0 0.0
        %950 = vmatprep.subr.mxu0 0.0
        %951 = vmatpush1.msra.mxu0 0.0
        %952 = vmatprep.subr.mxu0 0.0
        %953 = vmatpush1.msra.mxu0 0.0
        %954 = vmatprep.subr.mxu0 0.0
        %955 = vmatpush1.msra.mxu0 0.0
        %956 = vmatprep.subr.mxu0 0.0
        %957 = vmatpush1.msra.mxu0 0.0
        %958 = vmatprep.subr.mxu0 0.0
        %959 = vmatpush1.msra.mxu0 0.0
        %960 = vmatprep.subr.mxu0 0.0
        %961 = vmatpush1.msra.mxu0 0.0
        %962 = vmatprep.subr.mxu0 0.0
        %963 = vmatpush1.msra.mxu0 0.0
        %964 = vmatprep.subr.mxu0 0.0
        %965 = vmatpush1.msra.mxu0 0.0
        %966 = vmatprep.subr.mxu0 0.0
        %967 = vmatpush1.msra.mxu0 0.0
        %968 = vmatprep.subr.mxu0 0.0
        %969 = vmatpush1.msra.mxu0 0.0
        %970 = vmatprep.subr.mxu0 0.0
        %971 = vmatpush1.msra.mxu0 0.0
        %972 = vmatprep.subr.mxu0 0.0
        %973 = vmatpush1.msra.mxu0 0.0
        %974 = vmatprep.subr.mxu0 0.0
        %975 = vmatpush1.msra.mxu0 0.0
        %976 = vmatprep.subr.mxu0 0.0
        %977 = vmatpush1.msra.mxu0 0.0
        %978 = vmatprep.subr.mxu0 0.0
        %979 = vmatpush1.msra.mxu0 0.0
        %980 = vmatprep.mubr.f32.mxu0 0.0
        %981 = vmatmul.mubr.f32.gmra.mrb[0].mxu0 %v899
        %v982 = vpop.f32.mrb[0].mxu0
        %v983 = vadd.f32 0.0, %v982
        %v984 = vpop.f32.mrb[0].mxu0
        %985 = vdwg.mxu0
        %vm986 = vcmask 253952
        %987 = vst.msk [vmem:[%s411] sm:$0x1] %vm986, %v983
        %988 = vst [vmem:[%s417] sm:$0x1] %v899
        %s989 = sand.u32 %s252, 1
        %s990 = scalar_lea.sflag [#allocation5], %s989
        %s991 = sand.u32 %s252, 1
        %s992 = scalar_lea.vmem [#allocation4], %s991
        %s993 = sand.u32 %s278, 1
        %s994 = scalar_lea.sflag [#allocation7], %s993
        %s995 = sand.u32 %s278, 1
        %s996 = scalar_lea.vmem [#allocation6], %s995
        // Predicated region
        $region57: #{tpu_custom_call.1} parent=55 // pred_check
          %p997 = pneg %p262
        $region58: #{tpu_custom_call.1} parent=55 // pred_check_branch
          %999 = sbr.rel (%p997) target = $region60
        $region59: #{tpu_custom_call.1} parent=55 // pred_region
          %s1001 = ssub.s32 16, 16
          %1002 = vsyncadd %s990, %s1001
          %s1003 = smul.addr %s30, 16
          %s1004 = scalar_lea.hbm %s10, %s1003
          %s1006 = sshll.u32 %s992, 4
          %s1007 = int_to_ptr.vmem [resolvable:$true] %s1006
          %1009 = dma.vmem_to_hbm [thread:$0]  %s1007, 16, %s1004, %s990
        $region60: #{tpu_custom_call.1} parent=55 // pred_fallthru
          _
        // Predicated region
        $region61: #{tpu_custom_call.1} parent=55 // pred_check
          %p1010 = pneg %p288
        $region62: #{tpu_custom_call.1} parent=55 // pred_check_branch
          %1012 = sbr.rel (%p1010) target = $region64
        $region63: #{tpu_custom_call.1} parent=55 // pred_region
          %s1014 = ssub.s32 16, 16
          %1015 = vsyncadd %s994, %s1014
          %s1016 = smul.addr %s30, 16
          %s1017 = scalar_lea.hbm %s11, %s1016
          %s1019 = sshll.u32 %s996, 4
          %s1020 = int_to_ptr.vmem [resolvable:$true] %s1019
          %1022 = dma.vmem_to_hbm [thread:$0]  %s1020, 16, %s1017, %s994
        $region64: #{tpu_custom_call.1} parent=55 // pred_fallthru
          _
      $region56: #{tpu_custom_call.1} parent=5 // pred_fallthru
        _
      %p1023 = scmp.le.s32.totalorder 2, %s25
      // Predicated region
      $region65: #{tpu_custom_call.1} parent=5 // pred_check
        %p1024 = pneg %p1023
      $region66: #{tpu_custom_call.1} parent=5 // pred_check_branch
        %1026 = sbr.rel (%p1024) target = $region68
      $region67: #{tpu_custom_call.1} parent=5 // pred_region
        %s1027 = ssub.s32 %s25, 2
        // Predicated region
        $region69: #{tpu_custom_call.1} parent=67 // pred_check
          %p1028 = pneg %p268
        $region70: #{tpu_custom_call.1} parent=67 // pred_check_branch
          %1030 = sbr.rel (%p1028) target = $region72
        $region71: #{tpu_custom_call.1} parent=67 // pred_region
          %s1031 = sand.u32 %s253, 1
          %s1032 = scalar_lea.sflag [#allocation5], %s1031
          %s1033 = sand.u32 %s253, 1
          %s1034 = scalar_lea.vmem [#allocation4], %s1033
          %1035 = dma.done %s1032, 16
        $region72: #{tpu_custom_call.1} parent=67 // pred_fallthru
          _
        // Predicated region
        $region73: #{tpu_custom_call.1} parent=67 // pred_check
          %p1036 = pneg %p294
        $region74: #{tpu_custom_call.1} parent=67 // pred_check_branch
          %1038 = sbr.rel (%p1036) target = $region76
        $region75: #{tpu_custom_call.1} parent=67 // pred_region
          %s1039 = sand.u32 %s279, 1
          %s1040 = scalar_lea.sflag [#allocation7], %s1039
          %s1041 = sand.u32 %s279, 1
          %s1042 = scalar_lea.vmem [#allocation6], %s1041
          %1043 = dma.done %s1040, 16
        $region76: #{tpu_custom_call.1} parent=67 // pred_fallthru
          _
      $region68: #{tpu_custom_call.1} parent=5 // pred_fallthru
        _
    $region6: #{tpu_custom_call.1} parent=1 // loop_footer
      %s29 = sadd.s32 1, %s25
    $region7: #{tpu_custom_call.1} parent=1 // loop_footer_branch
      %24 = sbr.rel target = $region3
    $region8: #{tpu_custom_call.1} parent=1 // loop_exit
      _
    %1044 = vsyncpa [#allocation5], 1
    %s1045 = scalar_lea.sflag [#allocation5], 1
    %1046 = vsyncpa %s1045, 1
    %1047 = vsyncpa [#allocation7], 1
    %s1048 = scalar_lea.sflag [#allocation7], 1
    %1049 = vsyncpa %s1048, 1

</llo_original>
